<compile_context>
chip_gen: v5e
topology: v5e:2x2
jax: 0.10.0
libtpu: 0.0.40
codegen_flags: <defaults>
</compile_context>

<pallas_src>
import functools

import jax
import jax.numpy as jnp
from jax.experimental import pallas as pl
from jax.experimental.pallas import tpu as pltpu


def _qnet_kernel(x_ref, w1_ref, b1_ref, w2_ref, b2_ref, w3_ref, b3_ref, o_ref):
    # x_ref : (TB, S+A) bf16        w1_ref: (S+A, H) bf16     b1_ref: (1, H) f32
    # w2_ref: (H, H)    bf16        b2_ref: (1, H)   f32
    # w3_ref: (8, H)    bf16 (row 0 = fc3 weight, rows 1..7 zero)
    # b3_ref: (1, 1)    f32 in SMEM
    # o_ref : (1, TB)   f32  (lane-dense Q row for this batch tile)
    h1 = jnp.dot(x_ref[...], w1_ref[...], preferred_element_type=jnp.float32)
    h1 = jnp.maximum(h1 + b1_ref[...], 0.0).astype(jnp.bfloat16)      # relu(fc1)

    h2 = jnp.dot(h1, w2_ref[...], preferred_element_type=jnp.float32)
    h2 = jnp.maximum(h2 + b2_ref[...], 0.0).astype(jnp.bfloat16)      # relu(fc2)

    # fc3 computed as (8, H) @ (TB, H)^T -> (8, TB): the result is lane-dense
    # (batch on the lane axis) so the store is a handful of unmasked vst; only
    # row 0 is real, the 7 phantom rows are a negligible MXU cost vs fc2.
    q = jax.lax.dot_general(w3_ref[...], h2, (((1,), (1,)), ((), ())),
                            preferred_element_type=jnp.float32)       # (8, TB)
    o_ref[...] = (q[0:1, :] + b3_ref[0, 0]).astype(o_ref.dtype)


def prepare_params(torch_params):
    """One-time conversion from PyTorch Linear layout (out, in) to kernel layout."""
    w1 = jnp.asarray(torch_params["w1"], jnp.float32)   # (H, S+A)
    w2 = jnp.asarray(torch_params["w2"], jnp.float32)   # (H, H)
    w3 = jnp.asarray(torch_params["w3"], jnp.float32)   # (1, H)
    hidden = w2.shape[0]
    w3r8 = jnp.zeros((8, hidden), jnp.float32).at[0].set(w3[0])
    return {
        "w1": w1.T.astype(jnp.bfloat16),                                   # (S+A, H)
        "b1": jnp.asarray(torch_params["b1"], jnp.float32).reshape(1, -1),  # (1, H)
        "w2": w2.T.astype(jnp.bfloat16),                                   # (H, H)
        "b2": jnp.asarray(torch_params["b2"], jnp.float32).reshape(1, -1),  # (1, H)
        "w3r8": w3r8.astype(jnp.bfloat16),                                 # (8, H)
        "b3": jnp.asarray(torch_params["b3"], jnp.float32).reshape(1, 1),   # (1, 1)
    }


def _round_up(x, m):
    return ((x + m - 1) // m) * m


@functools.partial(jax.jit, static_argnames=("block_b",))
def qnetwork_forward(state, action, kparams, *, block_b=2048):
    """Fused forward: cat(state, action) -> fc1 -> relu -> fc2 -> relu -> fc3."""
    assert block_b % 128 == 0, "batch tile must be a multiple of 128"
    B = state.shape[0]
    # One K=16 contraction for fc1 (matches torch.cat); cast the streamed batch
    # to bf16 once in the wrapper to halve its HBM traffic.
    x = jnp.concatenate([state, action], axis=1).astype(jnp.bfloat16)   # (B, S+A)
    D = x.shape[1]
    H = kparams["w2"].shape[1]

    if B <= 256:
        # Single tile; block shape equals the full (8-padded) array so the
        # (8,128) BlockSpec rule is satisfied without lane padding.
        tb = _round_up(B, 8)
    else:
        # Multi-tile: 128-aligned tiles keep the lane-dense (1, tb) output block
        # legal; cap at >= 2 tiles so both v7x TensorCores get work.
        tb = min(block_b, _round_up(pl.cdiv(B, 2), 128))
    n_tiles = pl.cdiv(B, tb)
    b_pad = n_tiles * tb
    if b_pad != B:
        x = jnp.pad(x, ((0, b_pad - B), (0, 0)))

    def resident(shape):  # weights/biases: same block every grid step (fetched once)
        return pl.BlockSpec(shape, lambda i: (0, 0))

    out = pl.pallas_call(
        _qnet_kernel,
        out_shape=jax.ShapeDtypeStruct((1, b_pad), jnp.float32),
        grid=(n_tiles,),
        in_specs=[
            pl.BlockSpec((tb, D), lambda i: (i, 0)),            # batch tile (pipelined)
            resident((D, H)),                                   # W1
            resident((1, H)),                                   # b1
            resident((H, H)),                                   # W2
            resident((1, H)),                                   # b2
            resident((8, H)),                                   # W3 (row 0)
            pl.BlockSpec(memory_space=pltpu.MemorySpace.SMEM),  # b3 scalar
        ],
        out_specs=pl.BlockSpec((1, tb), lambda i: (0, i)),      # lane-dense Q row
        compiler_params=pltpu.CompilerParams(
            dimension_semantics=("parallel",),   # megacore sharding on v7x
        ),
    )(x, kparams["w1"], kparams["b1"], kparams["w2"], kparams["b2"],
      kparams["w3r8"], kparams["b3"])

    return out.reshape(-1)[:B].reshape(B, 1)


def init_params(key, state_dim, action_dim, hidden_dim):
    """Deterministic PyTorch-style uniform(-1/sqrt(fan_in), 1/sqrt(fan_in)) init."""
    ks = jax.random.split(key, 6)

    def lin(kw, kb, fan_in, fan_out):
        bound = 1.0 / jnp.sqrt(jnp.float32(fan_in))
        w = jax.random.uniform(kw, (fan_out, fan_in), jnp.float32, -bound, bound)
        b = jax.random.uniform(kb, (fan_out,), jnp.float32, -bound, bound)
        return w, b

    w1, b1 = lin(ks[0], ks[1], state_dim + action_dim, hidden_dim)
    w2, b2 = lin(ks[2], ks[3], hidden_dim, hidden_dim)
    w3, b3 = lin(ks[4], ks[5], hidden_dim, 1)
    return {"w1": w1, "b1": b1, "w2": w2, "b2": b2, "w3": w3, "b3": b3}


if __name__ == "__main__":
    # Module-default hidden_dim=256 (lane friendly).
    state_dim, action_dim, hidden_dim = 12, 4, 256

    key = jax.random.PRNGKey(0)
    k_params, k_s1, k_a1, k_s2, k_a2 = jax.random.split(key, 5)

    torch_params = init_params(k_params, state_dim, action_dim, hidden_dim)
    kparams = prepare_params(torch_params)   # one-time layout + bf16 conversion

    def reference_f32(st, ac):
        z = jnp.concatenate([st, ac], axis=1)
        h1 = jnp.maximum(z @ torch_params["w1"].T + torch_params["b1"], 0.0)
        h2 = jnp.maximum(h1 @ torch_params["w2"].T + torch_params["b2"], 0.0)
        return h2 @ torch_params["w3"].T + torch_params["b3"]

    def reference_bf16(st, ac):
        # Same cast points as the kernel; only accumulation order differs.
        z = jnp.concatenate([st, ac], axis=1).astype(jnp.bfloat16)
        h1 = jnp.maximum(
            jnp.dot(z, kparams["w1"], preferred_element_type=jnp.float32)
            + kparams["b1"], 0.0).astype(jnp.bfloat16)
        h2 = jnp.maximum(
            jnp.dot(h1, kparams["w2"], preferred_element_type=jnp.float32)
            + kparams["b2"], 0.0).astype(jnp.bfloat16)
        w3 = kparams["w3r8"][0:1]
        return (jnp.dot(h2, w3.T, preferred_element_type=jnp.float32)
                + kparams["b3"][0, 0])

    # Case 1: small ragged batch -> single tile (block equals full padded array).
    batch1 = 80
    s1 = jax.random.normal(k_s1, (batch1, state_dim), jnp.float32)
    a1 = jax.random.normal(k_a1, (batch1, action_dim), jnp.float32)
    q1 = qnetwork_forward(s1, a1, kparams)
    jax.block_until_ready(q1)
    assert q1.shape == (batch1, 1)
    assert jnp.allclose(q1, reference_bf16(s1, a1), atol=2e-2, rtol=2e-2)
    assert jnp.allclose(q1, reference_f32(s1, a1), atol=8e-2, rtol=8e-2)

    # Case 2: multi-tile grid with batch padding (exercises pipelining, the
    # lane-dense output blocks, and the >=2-tile megacore split).
    batch2 = 384
    s2 = jax.random.normal(k_s2, (batch2, state_dim), jnp.float32)
    a2 = jax.random.normal(k_a2, (batch2, action_dim), jnp.float32)
    q2 = qnetwork_forward(s2, a2, kparams)
    jax.block_until_ready(q2)
    assert q2.shape == (batch2, 1)
    assert jnp.allclose(q2, reference_bf16(s2, a2), atol=2e-2, rtol=2e-2)
    assert jnp.allclose(q2, reference_f32(s2, a2), atol=8e-2, rtol=8e-2)

    print("KERNEL_OK")
</pallas_src>

<mosaic_0001>
module attributes {stable_mosaic.version = 11 : i64} {
  func.func @_qnet_kernel(%arg0: i32, %arg1: memref<80x16xbf16, #tpu.memory_space<vmem>>, %arg2: memref<16x256xbf16, #tpu.memory_space<vmem>>, %arg3: memref<1x256xf32, #tpu.memory_space<vmem>>, %arg4: memref<256x256xbf16, #tpu.memory_space<vmem>>, %arg5: memref<1x256xf32, #tpu.memory_space<vmem>>, %arg6: memref<8x256xbf16, #tpu.memory_space<vmem>>, %arg7: memref<1x1xf32, #tpu.memory_space<smem>>, %arg8: memref<1x80xf32, #tpu.memory_space<vmem>>) attributes {dimension_semantics = [#tpu.dimension_semantics<parallel>], iteration_bounds = array<i64: 1>, scalar_prefetch = 0 : i64, scratch_operands = 0 : i64, tpu.core_type = #tpu.core_type<tc>, window_params = [{transform_indices = @transform_0, window_bounds = array<i64: 80, 16>}, {pipeline_mode = #tpu.pipeline_mode<synchronous>, transform_indices = @transform_1, window_bounds = array<i64: 16, 256>}, {pipeline_mode = #tpu.pipeline_mode<synchronous>, transform_indices = @transform_2, window_bounds = array<i64: 1, 256>}, {pipeline_mode = #tpu.pipeline_mode<synchronous>, transform_indices = @transform_3, window_bounds = array<i64: 256, 256>}, {pipeline_mode = #tpu.pipeline_mode<synchronous>, transform_indices = @transform_4, window_bounds = array<i64: 1, 256>}, {pipeline_mode = #tpu.pipeline_mode<synchronous>, transform_indices = @transform_5, window_bounds = array<i64: 8, 256>}, {transform_indices = @transform_6, window_bounds = array<i64: 1, 1>}, {transform_indices = @transform_7, window_bounds = array<i64: 1, 80>}]} {
    %c0 = arith.constant 0 : index
    %c0_0 = arith.constant 0 : index
    %0 = vector.load %arg1[%c0, %c0_0] : memref<80x16xbf16, #tpu.memory_space<vmem>>, vector<80x16xbf16>
    %c0_1 = arith.constant 0 : index
    %c0_2 = arith.constant 0 : index
    %1 = vector.load %arg2[%c0_1, %c0_2] : memref<16x256xbf16, #tpu.memory_space<vmem>>, vector<16x256xbf16>
    %cst = arith.constant dense<0.000000e+00> : vector<80x256xf32>
    %2 = tpu.matmul %0, %1, %cst {dimension_numbers = #tpu.dot_dimension_numbers<[1], [0], [0], [1], [0, 0, 1, 1], [], []>} : vector<80x16xbf16>, vector<16x256xbf16>, vector<80x256xf32> -> vector<80x256xf32>
    %c0_3 = arith.constant 0 : index
    %c0_4 = arith.constant 0 : index
    %3 = vector.load %arg3[%c0_3, %c0_4] : memref<1x256xf32, #tpu.memory_space<vmem>>, vector<1x256xf32>
    %4 = vector.broadcast %3 : vector<1x256xf32> to vector<80x256xf32>
    %5 = arith.addf %2, %4 : vector<80x256xf32>
    %cst_5 = arith.constant 0.000000e+00 : f32
    %6 = vector.broadcast %cst_5 : f32 to vector<80x256xf32>
    %7 = arith.maximumf %5, %6 : vector<80x256xf32>
    %8 = arith.truncf %7 : vector<80x256xf32> to vector<80x256xbf16>
    %c0_6 = arith.constant 0 : index
    %c0_7 = arith.constant 0 : index
    %9 = vector.load %arg4[%c0_6, %c0_7] : memref<256x256xbf16, #tpu.memory_space<vmem>>, vector<256x256xbf16>
    %cst_8 = arith.constant dense<0.000000e+00> : vector<80x256xf32>
    %10 = tpu.matmul %8, %9, %cst_8 {dimension_numbers = #tpu.dot_dimension_numbers<[1], [0], [0], [1], [0, 0, 1, 1], [], []>} : vector<80x256xbf16>, vector<256x256xbf16>, vector<80x256xf32> -> vector<80x256xf32>
    %c0_9 = arith.constant 0 : index
    %c0_10 = arith.constant 0 : index
    %11 = vector.load %arg5[%c0_9, %c0_10] : memref<1x256xf32, #tpu.memory_space<vmem>>, vector<1x256xf32>
    %12 = vector.broadcast %11 : vector<1x256xf32> to vector<80x256xf32>
    %13 = arith.addf %10, %12 : vector<80x256xf32>
    %cst_11 = arith.constant 0.000000e+00 : f32
    %14 = vector.broadcast %cst_11 : f32 to vector<80x256xf32>
    %15 = arith.maximumf %13, %14 : vector<80x256xf32>
    %16 = arith.truncf %15 : vector<80x256xf32> to vector<80x256xbf16>
    %c0_12 = arith.constant 0 : index
    %c0_13 = arith.constant 0 : index
    %17 = vector.load %arg6[%c0_12, %c0_13] : memref<8x256xbf16, #tpu.memory_space<vmem>>, vector<8x256xbf16>
    %cst_14 = arith.constant dense<0.000000e+00> : vector<8x80xf32>
    %18 = tpu.matmul %17, %16, %cst_14 {dimension_numbers = #tpu.dot_dimension_numbers<[1], [1], [0], [0], [0, 0, 1, 0], [], []>} : vector<8x256xbf16>, vector<80x256xbf16>, vector<8x80xf32> -> vector<8x80xf32>
    %19 = vector.extract_strided_slice %18 {offsets = [0, 0], sizes = [1, 80], strides = [1, 1]} : vector<8x80xf32> to vector<1x80xf32>
    %c0_15 = arith.constant 0 : index
    %c0_16 = arith.constant 0 : index
    %20 = memref.load %arg7[%c0_15, %c0_16] : memref<1x1xf32, #tpu.memory_space<smem>>
    %21 = vector.broadcast %20 : f32 to vector<1x80xf32>
    %22 = arith.addf %19, %21 : vector<1x80xf32>
    %c0_17 = arith.constant 0 : index
    %c0_18 = arith.constant 0 : index
    %23 = vector.load %arg8[%c0_17, %c0_18] : memref<1x80xf32, #tpu.memory_space<vmem>>, vector<1x80xf32>
    tpu.vector_store %arg8[%c0_17, %c0_18], %22 {strides = array<i32>} : memref<1x80xf32, #tpu.memory_space<vmem>>, vector<1x80xf32>,
    return
  }
  func.func @transform_0(%arg0: i32) -> (i32, i32) {
    %c0_i32 = arith.constant 0 : i32
    %c0_i32_0 = arith.constant 0 : i32
    return %arg0, %c0_i32 : i32, i32
  }
  func.func @transform_1(%arg0: i32) -> (i32, i32) {
    %c0_i32 = arith.constant 0 : i32
    %c0_i32_0 = arith.constant 0 : i32
    %c0_i32_1 = arith.constant 0 : i32
    return %c0_i32, %c0_i32_0 : i32, i32
  }
  func.func @transform_2(%arg0: i32) -> (i32, i32) {
    %c0_i32 = arith.constant 0 : i32
    %c0_i32_0 = arith.constant 0 : i32
    %c0_i32_1 = arith.constant 0 : i32
    return %c0_i32, %c0_i32_0 : i32, i32
  }
  func.func @transform_3(%arg0: i32) -> (i32, i32) {
    %c0_i32 = arith.constant 0 : i32
    %c0_i32_0 = arith.constant 0 : i32
    %c0_i32_1 = arith.constant 0 : i32
    return %c0_i32, %c0_i32_0 : i32, i32
  }
  func.func @transform_4(%arg0: i32) -> (i32, i32) {
    %c0_i32 = arith.constant 0 : i32
    %c0_i32_0 = arith.constant 0 : i32
    %c0_i32_1 = arith.constant 0 : i32
    return %c0_i32, %c0_i32_0 : i32, i32
  }
  func.func @transform_5(%arg0: i32) -> (i32, i32) {
    %c0_i32 = arith.constant 0 : i32
    %c0_i32_0 = arith.constant 0 : i32
    %c0_i32_1 = arith.constant 0 : i32
    return %c0_i32, %c0_i32_0 : i32, i32
  }
  func.func @transform_6(%arg0: i32) -> (i32, i32) {
    %c0_i32 = arith.constant 0 : i32
    %c0_i32_0 = arith.constant 0 : i32
    %c0_i32_1 = arith.constant 0 : i32
    return %c0_i32, %c0_i32_0 : i32, i32
  }
  func.func @transform_7(%arg0: i32) -> (i32, i32) {
    %c0_i32 = arith.constant 0 : i32
    %c0_i32_0 = arith.constant 0 : i32
    return %c0_i32, %arg0 : i32, i32
  }
}

</mosaic_0001>

<llo_original>
// kernel: qnetwork_forward.1
$region0: #{qnetwork_forward.1}
  #allocation0 [shape = 'u32[]', space=smem, size = 0x4, offset = 0x4, fixed_abs, tag = 'smem constant byte address 0x4 - core index']
  #allocation1 [shape = 'u32[72,128]{1,0:T(1,128)}', space=vmem, size = 0x9000, scoped, tag = 'internal scratch']
  #allocation2 [shape = 'f32[1,1]{1,0:T(1,128)S(6)}', space=smem, size = 0x200, scoped, tag = 'scoped memory for qnetwork_forward.1']
  %s0 = inlined_call_operand.vmem [shape: bf16[80,16], index: 0, kind: input, shape index: {}]
  %s1 = inlined_call_operand.vmem [shape: bf16[16,256], index: 1, kind: input, shape index: {}]
  %s2 = inlined_call_operand.vmem [shape: f32[1,256], index: 2, kind: input, shape index: {}]
  %s3 = inlined_call_operand.hbm [shape: bf16[256,256], index: 3, kind: input, shape index: {}]
  %s4 = inlined_call_operand.vmem [shape: f32[1,256], index: 4, kind: input, shape index: {}]
  %s5 = inlined_call_operand.vmem [shape: bf16[8,256], index: 5, kind: input, shape index: {}]
  %s6 = inlined_call_operand.<no memory space> [shape: f32[1,1], index: 6, kind: input, shape index: {}]
  %s7 = inlined_call_operand.hbm [shape: f32[1,80], index: 7, kind: output, shape index: {}]
  %s8 = sld [smem:[#allocation0]]
  $region42: #{qnetwork_forward.1} parent=0
    _
  %s10 = ssub.s32 1, %s8
  %s11 = scalar_select 0, %s10, %s8
  %12 = sst [smem:[#allocation2]] %s6
  $region1: #{qnetwork_forward.1} parent=0
    #allocation3 [shape = 'u8[131072]{0}', space=vmem, size = 0x20000, scoped, tag = 'input window, operand 3, single buffered']
    #allocation4 [shape = 's32[1]{0}', space=sflag, size = 0x4, scoped, tag = 'scoped memory for qnetwork_forward.1']
    #allocation5 [shape = 's32[1]{0}', space=sflag, size = 0x4, scoped, tag = 'scoped memory for qnetwork_forward.1']
    #allocation6 [shape = 'u8[512]{0}', space=vmem, size = 0x400, scoped, tag = 'output window, operand 0, single buffered']
    %13 = vsyncpa [#allocation4], 0
    %14 = vsyncpa [#allocation5], 0
    // Predicated region
    $region2: #{qnetwork_forward.1} parent=1 // pred_check
      _
    $region3: #{qnetwork_forward.1} parent=1 // pred_check_branch
      %16 = sbr.rel (0) target = $region5
    $region4: #{qnetwork_forward.1} parent=1 // pred_region
      _
    $region5: #{qnetwork_forward.1} parent=1 // pred_fallthru
      _
    // Predicated region
    $region6: #{qnetwork_forward.1} parent=1 // pred_check
      _
    $region7: #{qnetwork_forward.1} parent=1 // pred_check_branch
      %18 = sbr.rel (0) target = $region9
    $region8: #{qnetwork_forward.1} parent=1 // pred_region
      _
    $region9: #{qnetwork_forward.1} parent=1 // pred_fallthru
      _
    // Predicated region
    $region10: #{qnetwork_forward.1} parent=1 // pred_check
      _
    $region11: #{qnetwork_forward.1} parent=1 // pred_check_branch
      %20 = sbr.rel (0) target = $region13
    $region12: #{qnetwork_forward.1} parent=1 // pred_region
      _
    $region13: #{qnetwork_forward.1} parent=1 // pred_fallthru
      _
    // Predicated region
    $region14: #{qnetwork_forward.1} parent=1 // pred_check
      _
    $region15: #{qnetwork_forward.1} parent=1 // pred_check_branch
      %22 = sbr.rel (0) target = $region17
    $region16: #{qnetwork_forward.1} parent=1 // pred_region
      %24 = vsyncadd [#allocation4], 0
      %s25 = sshll.u32 %s3, 4
      %s26 = int_to_ptr.hbm [resolvable:$true] %s25
      %s27 = sshll.u32 [#allocation3], 4
      %s28 = int_to_ptr.vmem [resolvable:$true] %s27
      %33 = dma.hbm_to_vmem [thread:$0]  %s26, 4096, %s28, [#allocation4], 128, 128, 8
    $region17: #{qnetwork_forward.1} parent=1 // pred_fallthru
      _
    // Predicated region
    $region18: #{qnetwork_forward.1} parent=1 // pred_check
      _
    $region19: #{qnetwork_forward.1} parent=1 // pred_check_branch
      %35 = sbr.rel (0) target = $region21
    $region20: #{qnetwork_forward.1} parent=1 // pred_region
      _
    $region21: #{qnetwork_forward.1} parent=1 // pred_fallthru
      _
    // Predicated region
    $region22: #{qnetwork_forward.1} parent=1 // pred_check
      _
    $region23: #{qnetwork_forward.1} parent=1 // pred_check_branch
      %37 = sbr.rel (0) target = $region25
    $region24: #{qnetwork_forward.1} parent=1 // pred_region
      _
    $region25: #{qnetwork_forward.1} parent=1 // pred_fallthru
      _
    // Predicated region
    $region26: #{qnetwork_forward.1} parent=1 // pred_check
      _
    $region27: #{qnetwork_forward.1} parent=1 // pred_check_branch
      %39 = sbr.rel (0) target = $region29
    $region28: #{qnetwork_forward.1} parent=1 // pred_region
      _
    $region29: #{qnetwork_forward.1} parent=1 // pred_fallthru
      _
    // Predicated region
    $region30: #{qnetwork_forward.1} parent=1 // pred_check
      _
    $region31: #{qnetwork_forward.1} parent=1 // pred_check_branch
      %41 = sbr.rel (0) target = $region33
    $region32: #{qnetwork_forward.1} parent=1 // pred_region
      %43 = dma.done [#allocation4], 4096
    $region33: #{qnetwork_forward.1} parent=1 // pred_fallthru
      _
    %v45 = vld [vmem:[%s0] sm:$0xf]
    %v46 = vld [vmem:[%s0 + $0x4] sm:$0xf]
    %v47 = vld [vmem:[%s0 + $0x8] sm:$0xf]
    %v48 = vld [vmem:[%s0 + $0xc] sm:$0xf]
    %v49 = vld [vmem:[%s0 + $0x10] sm:$0xf]
    %v50 = vld [vmem:[%s0 + $0x14] sm:$0xf]
    %v51 = vld [vmem:[%s0 + $0x18] sm:$0xf]
    %v52 = vld [vmem:[%s0 + $0x1c] sm:$0xf]
    %v53 = vld [vmem:[%s0 + $0x20] sm:$0xf]
    %v54 = vld [vmem:[%s0 + $0x24] sm:$0xf]
    %v55 = vld [vmem:[%s1] sm:$0xff]
    %v56 = vld [vmem:[%s1 + $0x8] sm:$0xff]
    %v57 = vld [vmem:[%s2] sm:$0x3]
    %v59 = vperm.slane %v57, 0
    %v60 = vperm.slane %v57, 1
    %v73 = vunpack.c.l.b16 %v45
    %v74 = vunpack.c.l.b16 %v46
    %v75 = vunpack.c.l.b16 %v47
    %v76 = vunpack.c.l.b16 %v48
    %v77 = vunpack.c.l.b16 %v49
    %v78 = vunpack.c.l.b16 %v50
    %v79 = vunpack.c.l.b16 %v51
    %v80 = vunpack.c.l.b16 %v52
    %v81 = vunpack.c.l.b16 %v53
    %v82 = vunpack.c.l.b16 %v54
    %v83 = vpack.c.b16 %v74, %v73
    %v84 = vpack.c.b16 %v76, %v75
    %v85 = vpack.c.b16 %v78, %v77
    %v86 = vpack.c.b16 %v80, %v79
    %v87 = vpack.c.b16 %v82, %v81
    %v90 = vunpack.c.l.b16 %v55
    %v91 = vunpack.c.h.b16 %v55
    %v92 = vunpack.c.l.b16 %v56
    %v93 = vunpack.c.h.b16 %v56
    %v94 = vpack.c.b16 %v92, %v90
    %v95 = vpack.c.b16 %v93, %v91
    %vm98 = vcmask 130048
    %v100 = vsel %vm98, %v83, 0
    %v103 = vsel %vm98, %v84, 0
    %v106 = vsel %vm98, %v85, 0
    %v109 = vsel %vm98, %v86, 0
    %v112 = vsel %vm98, %v87, 0
    %114 = vmatpush.bf16.msra.mxu0 0
    %115 = vmatpush.bf16.msra.mxu0 0
    %116 = vmatpush.bf16.msra.mxu0 0
    %117 = vmatpush.bf16.msra.mxu0 0
    %118 = vmatpush.bf16.msra.mxu0 0
    %119 = vmatpush.bf16.msra.mxu0 0
    %120 = vmatpush.bf16.msra.mxu0 0
    %121 = vmatpush.bf16.msra.mxu0 %v94
    %122 = vmatmul.bf16.gmra.mxu0 %v100
    %v123 = vpop.f32.mrf.mxu0
    %v124 = vadd.f32 %v59, %v123
    %v125 = vpop.f32.mrf.mxu0
    %v126 = vadd.f32 %v59, %v125
    %127 = vmatmul.bf16.gmra.mxu0 %v103
    %v128 = vpop.f32.mrf.mxu0
    %v129 = vadd.f32 %v59, %v128
    %v130 = vpop.f32.mrf.mxu0
    %v131 = vadd.f32 %v59, %v130
    %132 = vmatmul.bf16.gmra.mxu0 %v106
    %v133 = vpop.f32.mrf.mxu0
    %v134 = vadd.f32 %v59, %v133
    %v135 = vpop.f32.mrf.mxu0
    %v136 = vadd.f32 %v59, %v135
    %137 = vmatmul.bf16.gmra.mxu0 %v109
    %v138 = vpop.f32.mrf.mxu0
    %v139 = vadd.f32 %v59, %v138
    %v140 = vpop.f32.mrf.mxu0
    %v141 = vadd.f32 %v59, %v140
    %142 = vmatmul.bf16.gmra.mxu0 %v112
    %v143 = vpop.f32.mrf.mxu0
    %v144 = vadd.f32 %v59, %v143
    %v145 = vpop.f32.mrf.mxu0
    %v146 = vadd.f32 %v59, %v145
    %147 = vdwg.mxu0
    %148 = vmatpush.bf16.msra.mxu0 0
    %149 = vmatpush.bf16.msra.mxu0 0
    %150 = vmatpush.bf16.msra.mxu0 0
    %151 = vmatpush.bf16.msra.mxu0 0
    %152 = vmatpush.bf16.msra.mxu0 0
    %153 = vmatpush.bf16.msra.mxu0 0
    %154 = vmatpush.bf16.msra.mxu0 0
    %155 = vmatpush.bf16.msra.mxu0 %v95
    %156 = vmatmul.bf16.gmra.mxu0 %v100
    %v157 = vpop.f32.mrf.mxu0
    %v158 = vadd.f32 %v60, %v157
    %v159 = vpop.f32.mrf.mxu0
    %v160 = vadd.f32 %v60, %v159
    %161 = vmatmul.bf16.gmra.mxu0 %v103
    %v162 = vpop.f32.mrf.mxu0
    %v163 = vadd.f32 %v60, %v162
    %v164 = vpop.f32.mrf.mxu0
    %v165 = vadd.f32 %v60, %v164
    %166 = vmatmul.bf16.gmra.mxu0 %v106
    %v167 = vpop.f32.mrf.mxu0
    %v168 = vadd.f32 %v60, %v167
    %v169 = vpop.f32.mrf.mxu0
    %v170 = vadd.f32 %v60, %v169
    %171 = vmatmul.bf16.gmra.mxu0 %v109
    %v172 = vpop.f32.mrf.mxu0
    %v173 = vadd.f32 %v60, %v172
    %v174 = vpop.f32.mrf.mxu0
    %v175 = vadd.f32 %v60, %v174
    %176 = vmatmul.bf16.gmra.mxu0 %v112
    %v177 = vpop.f32.mrf.mxu0
    %v178 = vadd.f32 %v60, %v177
    %v179 = vpop.f32.mrf.mxu0
    %v180 = vadd.f32 %v60, %v179
    %181 = vdwg.mxu0
    %v182 = vmax.f32 %v124, 0.0
    %v183 = vmax.f32 %v158, 0.0
    %v184 = vmax.f32 %v126, 0.0
    %v185 = vmax.f32 %v160, 0.0
    %v186 = vmax.f32 %v129, 0.0
    %v187 = vmax.f32 %v163, 0.0
    %v188 = vmax.f32 %v131, 0.0
    %v189 = vmax.f32 %v165, 0.0
    %v190 = vmax.f32 %v134, 0.0
    %v191 = vmax.f32 %v168, 0.0
    %v192 = vmax.f32 %v136, 0.0
    %v193 = vmax.f32 %v170, 0.0
    %v194 = vmax.f32 %v139, 0.0
    %v195 = vmax.f32 %v173, 0.0
    %v196 = vmax.f32 %v141, 0.0
    %v197 = vmax.f32 %v175, 0.0
    %v198 = vmax.f32 %v144, 0.0
    %v199 = vmax.f32 %v178, 0.0
    %v200 = vmax.f32 %v146, 0.0
    %v201 = vmax.f32 %v180, 0.0
    %v202 = vpack.c.bf16 %v184, %v182
    %v203 = vpack.c.bf16 %v185, %v183
    %v204 = vpack.c.bf16 %v188, %v186
    %v205 = vpack.c.bf16 %v189, %v187
    %v206 = vpack.c.bf16 %v192, %v190
    %v207 = vpack.c.bf16 %v193, %v191
    %v208 = vpack.c.bf16 %v196, %v194
    %v209 = vpack.c.bf16 %v197, %v195
    %v210 = vpack.c.bf16 %v200, %v198
    %v211 = vpack.c.bf16 %v201, %v199
    %v212 = vld [vmem:[#allocation3] sm:$0xff]
    %v213 = vld [vmem:[#allocation3 + $0x8] sm:$0xff]
    %v214 = vld [vmem:[#allocation3 + $0x10] sm:$0xff]
    %v215 = vld [vmem:[#allocation3 + $0x18] sm:$0xff]
    %v216 = vld [vmem:[#allocation3 + $0x20] sm:$0xff]
    %v217 = vld [vmem:[#allocation3 + $0x28] sm:$0xff]
    %v218 = vld [vmem:[#allocation3 + $0x30] sm:$0xff]
    %v219 = vld [vmem:[#allocation3 + $0x38] sm:$0xff]
    %v220 = vld [vmem:[#allocation3 + $0x40] sm:$0xff]
    %v221 = vld [vmem:[#allocation3 + $0x48] sm:$0xff]
    %v222 = vld [vmem:[#allocation3 + $0x50] sm:$0xff]
    %v223 = vld [vmem:[#allocation3 + $0x58] sm:$0xff]
    %v224 = vld [vmem:[#allocation3 + $0x60] sm:$0xff]
    %v225 = vld [vmem:[#allocation3 + $0x68] sm:$0xff]
    %v226 = vld [vmem:[#allocation3 + $0x70] sm:$0xff]
    %v227 = vld [vmem:[#allocation3 + $0x78] sm:$0xff]
    %v228 = vld [vmem:[#allocation3 + $0x80] sm:$0xff]
    %v229 = vld [vmem:[#allocation3 + $0x88] sm:$0xff]
    %v230 = vld [vmem:[#allocation3 + $0x90] sm:$0xff]
    %v231 = vld [vmem:[#allocation3 + $0x98] sm:$0xff]
    %v232 = vld [vmem:[#allocation3 + $0xa0] sm:$0xff]
    %v233 = vld [vmem:[#allocation3 + $0xa8] sm:$0xff]
    %v234 = vld [vmem:[#allocation3 + $0xb0] sm:$0xff]
    %v235 = vld [vmem:[#allocation3 + $0xb8] sm:$0xff]
    %v236 = vld [vmem:[#allocation3 + $0xc0] sm:$0xff]
    %v237 = vld [vmem:[#allocation3 + $0xc8] sm:$0xff]
    %v238 = vld [vmem:[#allocation3 + $0xd0] sm:$0xff]
    %v239 = vld [vmem:[#allocation3 + $0xd8] sm:$0xff]
    %v240 = vld [vmem:[#allocation3 + $0xe0] sm:$0xff]
    %v241 = vld [vmem:[#allocation3 + $0xe8] sm:$0xff]
    %v242 = vld [vmem:[#allocation3 + $0xf0] sm:$0xff]
    %v243 = vld [vmem:[#allocation3 + $0xf8] sm:$0xff]
    %v244 = vld [vmem:[%s4] sm:$0x3]
    %v246 = vperm.slane %v244, 0
    %v247 = vperm.slane %v244, 1
    %v282 = vunpack.c.l.b16 %v212
    %v283 = vunpack.c.h.b16 %v212
    %v284 = vunpack.c.l.b16 %v213
    %v285 = vunpack.c.h.b16 %v213
    %v286 = vunpack.c.l.b16 %v214
    %v287 = vunpack.c.h.b16 %v214
    %v288 = vunpack.c.l.b16 %v215
    %v289 = vunpack.c.h.b16 %v215
    %v290 = vunpack.c.l.b16 %v216
    %v291 = vunpack.c.h.b16 %v216
    %v292 = vunpack.c.l.b16 %v217
    %v293 = vunpack.c.h.b16 %v217
    %v294 = vunpack.c.l.b16 %v218
    %v295 = vunpack.c.h.b16 %v218
    %v296 = vunpack.c.l.b16 %v219
    %v297 = vunpack.c.h.b16 %v219
    %v298 = vunpack.c.l.b16 %v220
    %v299 = vunpack.c.h.b16 %v220
    %v300 = vunpack.c.l.b16 %v221
    %v301 = vunpack.c.h.b16 %v221
    %v302 = vunpack.c.l.b16 %v222
    %v303 = vunpack.c.h.b16 %v222
    %v304 = vunpack.c.l.b16 %v223
    %v305 = vunpack.c.h.b16 %v223
    %v306 = vunpack.c.l.b16 %v224
    %v307 = vunpack.c.h.b16 %v224
    %v308 = vunpack.c.l.b16 %v225
    %v309 = vunpack.c.h.b16 %v225
    %v310 = vunpack.c.l.b16 %v226
    %v311 = vunpack.c.h.b16 %v226
    %v312 = vunpack.c.l.b16 %v227
    %v313 = vunpack.c.h.b16 %v227
    %v314 = vunpack.c.l.b16 %v228
    %v315 = vunpack.c.h.b16 %v228
    %v316 = vunpack.c.l.b16 %v229
    %v317 = vunpack.c.h.b16 %v229
    %v318 = vunpack.c.l.b16 %v230
    %v319 = vunpack.c.h.b16 %v230
    %v320 = vunpack.c.l.b16 %v231
    %v321 = vunpack.c.h.b16 %v231
    %v322 = vunpack.c.l.b16 %v232
    %v323 = vunpack.c.h.b16 %v232
    %v324 = vunpack.c.l.b16 %v233
    %v325 = vunpack.c.h.b16 %v233
    %v326 = vunpack.c.l.b16 %v234
    %v327 = vunpack.c.h.b16 %v234
    %v328 = vunpack.c.l.b16 %v235
    %v329 = vunpack.c.h.b16 %v235
    %v330 = vunpack.c.l.b16 %v236
    %v331 = vunpack.c.h.b16 %v236
    %v332 = vunpack.c.l.b16 %v237
    %v333 = vunpack.c.h.b16 %v237
    %v334 = vunpack.c.l.b16 %v238
    %v335 = vunpack.c.h.b16 %v238
    %v336 = vunpack.c.l.b16 %v239
    %v337 = vunpack.c.h.b16 %v239
    %v338 = vunpack.c.l.b16 %v240
    %v339 = vunpack.c.h.b16 %v240
    %v340 = vunpack.c.l.b16 %v241
    %v341 = vunpack.c.h.b16 %v241
    %v342 = vunpack.c.l.b16 %v242
    %v343 = vunpack.c.h.b16 %v242
    %v344 = vunpack.c.l.b16 %v243
    %v345 = vunpack.c.h.b16 %v243
    %v346 = vpack.c.b16 %v284, %v282
    %v347 = vpack.c.b16 %v285, %v283
    %v348 = vpack.c.b16 %v288, %v286
    %v349 = vpack.c.b16 %v289, %v287
    %v350 = vpack.c.b16 %v292, %v290
    %v351 = vpack.c.b16 %v293, %v291
    %v352 = vpack.c.b16 %v296, %v294
    %v353 = vpack.c.b16 %v297, %v295
    %v354 = vpack.c.b16 %v300, %v298
    %v355 = vpack.c.b16 %v301, %v299
    %v356 = vpack.c.b16 %v304, %v302
    %v357 = vpack.c.b16 %v305, %v303
    %v358 = vpack.c.b16 %v308, %v306
    %v359 = vpack.c.b16 %v309, %v307
    %v360 = vpack.c.b16 %v312, %v310
    %v361 = vpack.c.b16 %v313, %v311
    %v362 = vpack.c.b16 %v316, %v314
    %v363 = vpack.c.b16 %v317, %v315
    %v364 = vpack.c.b16 %v320, %v318
    %v365 = vpack.c.b16 %v321, %v319
    %v366 = vpack.c.b16 %v324, %v322
    %v367 = vpack.c.b16 %v325, %v323
    %v368 = vpack.c.b16 %v328, %v326
    %v369 = vpack.c.b16 %v329, %v327
    %v370 = vpack.c.b16 %v332, %v330
    %v371 = vpack.c.b16 %v333, %v331
    %v372 = vpack.c.b16 %v336, %v334
    %v373 = vpack.c.b16 %v337, %v335
    %v374 = vpack.c.b16 %v340, %v338
    %v375 = vpack.c.b16 %v341, %v339
    %v376 = vpack.c.b16 %v344, %v342
    %v377 = vpack.c.b16 %v345, %v343
    %410 = vmatpush.bf16.msra.mxu0 %v360
    %411 = vmatpush.bf16.msra.mxu0 %v358
    %412 = vmatpush.bf16.msra.mxu0 %v356
    %413 = vmatpush.bf16.msra.mxu0 %v354
    %414 = vmatpush.bf16.msra.mxu0 %v352
    %415 = vmatpush.bf16.msra.mxu0 %v350
    %416 = vmatpush.bf16.msra.mxu0 %v348
    %417 = vmatpush.bf16.msra.mxu0 %v346
    %418 = vmatmul.bf16.gmra.mxu0 %v202
    %v419 = vpop.f32.mrf.mxu0
    %v420 = vadd.f32 %v246, %v419
    %v421 = vpop.f32.mrf.mxu0
    %v422 = vadd.f32 %v246, %v421
    %423 = vmatmul.bf16.gmra.mxu0 %v204
    %v424 = vpop.f32.mrf.mxu0
    %v425 = vadd.f32 %v246, %v424
    %v426 = vpop.f32.mrf.mxu0
    %v427 = vadd.f32 %v246, %v426
    %428 = vmatmul.bf16.gmra.mxu0 %v206
    %v429 = vpop.f32.mrf.mxu0
    %v430 = vadd.f32 %v246, %v429
    %v431 = vpop.f32.mrf.mxu0
    %v432 = vadd.f32 %v246, %v431
    %433 = vmatmul.bf16.gmra.mxu0 %v208
    %v434 = vpop.f32.mrf.mxu0
    %v435 = vadd.f32 %v246, %v434
    %v436 = vpop.f32.mrf.mxu0
    %v437 = vadd.f32 %v246, %v436
    %438 = vmatmul.bf16.gmra.mxu0 %v210
    %v439 = vpop.f32.mrf.mxu0
    %v440 = vadd.f32 %v246, %v439
    %v441 = vpop.f32.mrf.mxu0
    %v442 = vadd.f32 %v246, %v441
    %443 = vdwg.mxu0
    %444 = vmatpush.bf16.msra.mxu0 %v376
    %445 = vmatpush.bf16.msra.mxu0 %v374
    %446 = vmatpush.bf16.msra.mxu0 %v372
    %447 = vmatpush.bf16.msra.mxu0 %v370
    %448 = vmatpush.bf16.msra.mxu0 %v368
    %449 = vmatpush.bf16.msra.mxu0 %v366
    %450 = vmatpush.bf16.msra.mxu0 %v364
    %451 = vmatpush.bf16.msra.mxu0 %v362
    %452 = vmatmul.bf16.gmra.mxu0 %v203
    %v453 = vpop.f32.mrf.mxu0
    %v454 = vadd.f32 %v420, %v453
    %v455 = vpop.f32.mrf.mxu0
    %v456 = vadd.f32 %v422, %v455
    %457 = vmatmul.bf16.gmra.mxu0 %v205
    %v458 = vpop.f32.mrf.mxu0
    %v459 = vadd.f32 %v425, %v458
    %v460 = vpop.f32.mrf.mxu0
    %v461 = vadd.f32 %v427, %v460
    %462 = vmatmul.bf16.gmra.mxu0 %v207
    %v463 = vpop.f32.mrf.mxu0
    %v464 = vadd.f32 %v430, %v463
    %v465 = vpop.f32.mrf.mxu0
    %v466 = vadd.f32 %v432, %v465
    %467 = vmatmul.bf16.gmra.mxu0 %v209
    %v468 = vpop.f32.mrf.mxu0
    %v469 = vadd.f32 %v435, %v468
    %v470 = vpop.f32.mrf.mxu0
    %v471 = vadd.f32 %v437, %v470
    %472 = vmatmul.bf16.gmra.mxu0 %v211
    %v473 = vpop.f32.mrf.mxu0
    %v474 = vadd.f32 %v440, %v473
    %v475 = vpop.f32.mrf.mxu0
    %v476 = vadd.f32 %v442, %v475
    %477 = vdwg.mxu0
    %478 = vmatpush.bf16.msra.mxu0 %v361
    %479 = vmatpush.bf16.msra.mxu0 %v359
    %480 = vmatpush.bf16.msra.mxu0 %v357
    %481 = vmatpush.bf16.msra.mxu0 %v355
    %482 = vmatpush.bf16.msra.mxu0 %v353
    %483 = vmatpush.bf16.msra.mxu0 %v351
    %484 = vmatpush.bf16.msra.mxu0 %v349
    %485 = vmatpush.bf16.msra.mxu0 %v347
    %486 = vmatmul.bf16.gmra.mxu0 %v202
    %v487 = vpop.f32.mrf.mxu0
    %v488 = vadd.f32 %v247, %v487
    %v489 = vpop.f32.mrf.mxu0
    %v490 = vadd.f32 %v247, %v489
    %491 = vmatmul.bf16.gmra.mxu0 %v204
    %v492 = vpop.f32.mrf.mxu0
    %v493 = vadd.f32 %v247, %v492
    %v494 = vpop.f32.mrf.mxu0
    %v495 = vadd.f32 %v247, %v494
    %496 = vmatmul.bf16.gmra.mxu0 %v206
    %v497 = vpop.f32.mrf.mxu0
    %v498 = vadd.f32 %v247, %v497
    %v499 = vpop.f32.mrf.mxu0
    %v500 = vadd.f32 %v247, %v499
    %501 = vmatmul.bf16.gmra.mxu0 %v208
    %v502 = vpop.f32.mrf.mxu0
    %v503 = vadd.f32 %v247, %v502
    %v504 = vpop.f32.mrf.mxu0
    %v505 = vadd.f32 %v247, %v504
    %506 = vmatmul.bf16.gmra.mxu0 %v210
    %v507 = vpop.f32.mrf.mxu0
    %v508 = vadd.f32 %v247, %v507
    %v509 = vpop.f32.mrf.mxu0
    %v510 = vadd.f32 %v247, %v509
    %511 = vdwg.mxu0
    %512 = vmatpush.bf16.msra.mxu0 %v377
    %513 = vmatpush.bf16.msra.mxu0 %v375
    %514 = vmatpush.bf16.msra.mxu0 %v373
    %515 = vmatpush.bf16.msra.mxu0 %v371
    %516 = vmatpush.bf16.msra.mxu0 %v369
    %517 = vmatpush.bf16.msra.mxu0 %v367
    %518 = vmatpush.bf16.msra.mxu0 %v365
    %519 = vmatpush.bf16.msra.mxu0 %v363
    %520 = vmatmul.bf16.gmra.mxu0 %v203
    %v521 = vpop.f32.mrf.mxu0
    %v522 = vadd.f32 %v488, %v521
    %v523 = vpop.f32.mrf.mxu0
    %v524 = vadd.f32 %v490, %v523
    %525 = vmatmul.bf16.gmra.mxu0 %v205
    %v526 = vpop.f32.mrf.mxu0
    %v527 = vadd.f32 %v493, %v526
    %v528 = vpop.f32.mrf.mxu0
    %v529 = vadd.f32 %v495, %v528
    %530 = vmatmul.bf16.gmra.mxu0 %v207
    %v531 = vpop.f32.mrf.mxu0
    %v532 = vadd.f32 %v498, %v531
    %v533 = vpop.f32.mrf.mxu0
    %v534 = vadd.f32 %v500, %v533
    %535 = vmatmul.bf16.gmra.mxu0 %v209
    %v536 = vpop.f32.mrf.mxu0
    %v537 = vadd.f32 %v503, %v536
    %v538 = vpop.f32.mrf.mxu0
    %v539 = vadd.f32 %v505, %v538
    %540 = vmatmul.bf16.gmra.mxu0 %v211
    %v541 = vpop.f32.mrf.mxu0
    %v542 = vadd.f32 %v508, %v541
    %v543 = vpop.f32.mrf.mxu0
    %v544 = vadd.f32 %v510, %v543
    %545 = vdwg.mxu0
    %v546 = vmax.f32 %v454, 0.0
    %v547 = vmax.f32 %v522, 0.0
    %v548 = vmax.f32 %v456, 0.0
    %v549 = vmax.f32 %v524, 0.0
    %v550 = vmax.f32 %v459, 0.0
    %v551 = vmax.f32 %v527, 0.0
    %v552 = vmax.f32 %v461, 0.0
    %v553 = vmax.f32 %v529, 0.0
    %v554 = vmax.f32 %v464, 0.0
    %v555 = vmax.f32 %v532, 0.0
    %v556 = vmax.f32 %v466, 0.0
    %v557 = vmax.f32 %v534, 0.0
    %v558 = vmax.f32 %v469, 0.0
    %v559 = vmax.f32 %v537, 0.0
    %v560 = vmax.f32 %v471, 0.0
    %v561 = vmax.f32 %v539, 0.0
    %v562 = vmax.f32 %v474, 0.0
    %v563 = vmax.f32 %v542, 0.0
    %v564 = vmax.f32 %v476, 0.0
    %v565 = vmax.f32 %v544, 0.0
    %v566 = vpack.c.bf16 %v548, %v546
    %v567 = vpack.c.bf16 %v549, %v547
    %v568 = vpack.c.bf16 %v552, %v550
    %v569 = vpack.c.bf16 %v553, %v551
    %v570 = vpack.c.bf16 %v556, %v554
    %v571 = vpack.c.bf16 %v557, %v555
    %v572 = vpack.c.bf16 %v560, %v558
    %v573 = vpack.c.bf16 %v561, %v559
    %v574 = vpack.c.bf16 %v564, %v562
    %v575 = vpack.c.bf16 %v565, %v563
    %v576 = vld [vmem:[%s5] sm:$0xff]
    %v578 = vunpack.c.l.b16 %v576
    %v579 = vunpack.c.h.b16 %v576
    %v580 = vpack.c.b16 %v578, %v578
    %v581 = vpack.c.b16 %v579, %v579
    %584 = vmatpush.bf16.xpose.msra.mxu0 0
    %585 = vmatpush.bf16.xpose.msra.mxu0 0
    %586 = vmatpush.bf16.xpose.msra.mxu0 0
    %587 = vmatpush.bf16.xpose.msra.mxu0 %v574
    %588 = vmatpush.bf16.xpose.msra.mxu0 %v572
    %589 = vmatpush.bf16.xpose.msra.mxu0 %v570
    %590 = vmatpush.bf16.xpose.msra.mxu0 %v568
    %591 = vmatpush.bf16.xpose.msra.mxu0 %v566
    %592 = vmatmul.bf16.gmra.mxu0 %v580
    %v593 = vpop.f32.mrf.mxu0
    %v594 = vadd.f32 0.0, %v593
    %v595 = vpop.f32.mrf.mxu0
    %596 = vdwg.mxu0
    %597 = vmatpush.bf16.xpose.msra.mxu0 0
    %598 = vmatpush.bf16.xpose.msra.mxu0 0
    %599 = vmatpush.bf16.xpose.msra.mxu0 0
    %600 = vmatpush.bf16.xpose.msra.mxu0 %v575
    %601 = vmatpush.bf16.xpose.msra.mxu0 %v573
    %602 = vmatpush.bf16.xpose.msra.mxu0 %v571
    %603 = vmatpush.bf16.xpose.msra.mxu0 %v569
    %604 = vmatpush.bf16.xpose.msra.mxu0 %v567
    %605 = vmatmul.bf16.gmra.mxu0 %v581
    %v606 = vpop.f32.mrf.mxu0
    %v607 = vadd.f32 %v594, %v606
    %v608 = vpop.f32.mrf.mxu0
    %609 = vdwg.mxu0
    %s610 = sld [smem:[#allocation2]]
    %v611 = vstv %s610
    %v612 = vadd.f32 %v607, %v611
    %vm613 = vcmask 647168
    %614 = vst.msk [vmem:[#allocation6] sm:$0x1] %vm613, %v612
    // Predicated region
    $region34: #{qnetwork_forward.1} parent=1 // pred_check
      _
    $region35: #{qnetwork_forward.1} parent=1 // pred_check_branch
      %616 = sbr.rel (0) target = $region37
    $region36: #{qnetwork_forward.1} parent=1 // pred_region
      %618 = vsyncadd [#allocation5], 0
      %s620 = sshll.u32 [#allocation6], 4
      %s621 = int_to_ptr.vmem [resolvable:$true] %s620
      %s622 = sshll.u32 %s7, 4
      %s623 = int_to_ptr.hbm [resolvable:$true] %s622
      %625 = dma.vmem_to_hbm [thread:$0]  %s621, 16, %s623, [#allocation5]
    $region37: #{qnetwork_forward.1} parent=1 // pred_fallthru
      _
    // Predicated region
    $region38: #{qnetwork_forward.1} parent=1 // pred_check
      _
    $region39: #{qnetwork_forward.1} parent=1 // pred_check_branch
      %627 = sbr.rel (0) target = $region41
    $region40: #{qnetwork_forward.1} parent=1 // pred_region
      %629 = dma.done [#allocation5], 16
    $region41: #{qnetwork_forward.1} parent=1 // pred_fallthru
      _
    %630 = vsyncpa [#allocation4], 1
    %631 = vsyncpa [#allocation5], 1

</llo_original>
